<compile_context>
chip_gen: v5e
topology: v5e:2x2
jax: 0.10.0
libtpu: 0.0.40
codegen_flags: <defaults>
</compile_context>

<pallas_src>
import jax
import jax.numpy as jnp
from jax.experimental import pallas as pl
from jax.experimental.pallas import tpu as pltpu


def _conv1d_block_kernel(x_ref, w1_ref, b1_ref, w2_ref, b2_ref, w3_ref, b3_ref,
                         o_ref):
    # x_ref : (Bt, C_in, L)         PyTorch Conv1d layout, L on the lane axis
    # wN_ref: (K, C_out_N, C_in_N)  tap-major weights
    # bN_ref: (C_out_N, 1)          column bias (C_out on sublanes)
    # o_ref : (Bt, C_out, L)
    Bt, _, L = x_ref.shape
    K = w1_ref.shape[0]
    pad_l = (K - 1) // 2

    def shift_l(h, s):
        # out[..., l] = h[..., l + s], zero outside [0, L).
        # Lane roll on the XLU plus a VPU select; no VMEM scratch round-trip.
        if s == 0:
            return h
        rolled = pltpu.roll(h, shift=(-s) % L, axis=2)
        lane = jax.lax.broadcasted_iota(jnp.int32, h.shape, 2)
        valid = jnp.logical_and(lane + s >= 0, lane + s < L)
        return jnp.where(valid, rolled, jnp.zeros_like(rolled))

    def conv(h, w_ref, b_ref):
        # y[b, o, l] = sum_k sum_c w[k, o, c] * h[b, c, l + k - pad_l] + bias[o]
        # K batched MXU matmuls; operands stay in their native dtype, the
        # accumulator is f32 via preferred_element_type.
        c_out, c_in = w_ref.shape[1], w_ref.shape[2]
        acc = None
        for k in range(K):
            w_k = jnp.broadcast_to(w_ref[k][None], (Bt, c_out, c_in))
            part = jax.lax.dot_general(
                w_k, shift_l(h, k - pad_l),
                dimension_numbers=(((2,), (1,)), ((0,), (0,))),
                preferred_element_type=jnp.float32)
            acc = part if acc is None else acc + part
        return acc + b_ref[...][None].astype(jnp.float32)

    def elu(z):
        # ELU, alpha = 1.0.  exp(z) - 1 (instead of expm1) keeps the lowering on
        # the guaranteed EUP exp path; the absolute error vs expm1 is <= ~1 ulp
        # of 1.0 (~1e-7 in f32), far below forward-pass tolerance.
        return jnp.where(z > 0, z, jnp.exp(z) - 1.0)

    in_dt = x_ref.dtype
    h1 = elu(conv(x_ref[...], w1_ref, b1_ref)).astype(in_dt)   # (Bt, C_hid, L)
    h2 = elu(conv(h1, w2_ref, b2_ref)).astype(in_dt)           # (Bt, C_hid, L)
    y = conv(h2, w3_ref, b3_ref)                               # (Bt, C_out, L)
    o_ref[...] = y.astype(o_ref.dtype)


def _pick_batch_tile(B, bytes_per_batch, vmem_budget=6 * 1024 * 1024):
    """Largest divisor of B that fits the per-step VMEM budget while keeping
    >= 2 grid steps whenever B >= 2 (so both v7x TensorCores get work)."""
    cap = max(1, vmem_budget // max(bytes_per_batch, 1))
    for bt in range(min(B, cap), 0, -1):
        if B % bt == 0 and (B // bt >= 2 or B < 2):
            return bt
    return 1


def conv1d_block(x, w1, b1, w2, b2, w3, b3):
    """Conv1dBlock forward, PyTorch layouts throughout.

    x : (B, C_in, L)
    wN: (C_out_N, C_in_N, K)   (native PyTorch Conv1d weight layout)
    bN: (C_out_N,)
    returns (B, C_out, L)
    """
    B, C_in, L = x.shape
    C_hid, _, K = w1.shape
    C_out = w3.shape[0]

    # Tap-major weights (K, C_out, C_in) and column biases (C_out, 1): tiny,
    # one-time re-arrangements. The activation tensor itself takes zero extra
    # HBM passes (no wrapper transpose / pad of x, no output transpose).
    w1_t = jnp.transpose(w1, (2, 0, 1))
    w2_t = jnp.transpose(w2, (2, 0, 1))
    w3_t = jnp.transpose(w3, (2, 0, 1))
    b1_c = b1.reshape(C_hid, 1)
    b2_c = b2.reshape(C_hid, 1)
    b3_c = b3.reshape(C_out, 1)

    # Rough per-batch-element live f32 footprint inside the kernel
    # (input block, intermediates, rolled copies, accumulator).
    c_max = max(C_in, C_hid, C_out)
    bytes_per_batch = 6 * L * c_max * 4
    Bt = _pick_batch_tile(B, bytes_per_batch)

    grid_spec = pltpu.PrefetchScalarGridSpec(
        num_scalar_prefetch=0,
        grid=(B // Bt,),
        in_specs=[
            pl.BlockSpec((Bt, C_in, L), lambda i: (i, 0, 0)),
            pl.BlockSpec((K, C_hid, C_in), lambda i: (0, 0, 0)),
            pl.BlockSpec((C_hid, 1), lambda i: (0, 0)),
            pl.BlockSpec((K, C_hid, C_hid), lambda i: (0, 0, 0)),
            pl.BlockSpec((C_hid, 1), lambda i: (0, 0)),
            pl.BlockSpec((K, C_out, C_hid), lambda i: (0, 0, 0)),
            pl.BlockSpec((C_out, 1), lambda i: (0, 0)),
        ],
        out_specs=pl.BlockSpec((Bt, C_out, L), lambda i: (i, 0, 0)),
    )

    return pl.pallas_call(
        _conv1d_block_kernel,
        out_shape=jax.ShapeDtypeStruct((B, C_out, L), x.dtype),
        grid_spec=grid_spec,
        compiler_params=pltpu.CompilerParams(
            dimension_semantics=("parallel",),
            # Bt is budgeted to a few MiB of live data per step, so 32 MiB is
            # ample on v5e/v6e and safe on v7x's 64 MiB physical VMEM.
            vmem_limit_bytes=32 * 1024 * 1024,
        ),
    )(x, w1_t, b1_c, w2_t, b2_c, w3_t, b3_c)


def _reference(x, w1, b1, w2, b2, w3, b3):
    """Pure-JAX reference matching PyTorch Conv1d(padding='same') + ELU stack."""
    def conv_same(h, w, b):
        y = jax.lax.conv_general_dilated(
            h, w, window_strides=(1,), padding="SAME",
            dimension_numbers=("NCH", "OIH", "NCH"))
        return y + b[None, :, None]

    h = jax.nn.elu(conv_same(x, w1, b1))
    h = jax.nn.elu(conv_same(h, w2, b2))
    return conv_same(h, w3, b3)


if __name__ == "__main__":
    key = jax.random.PRNGKey(0)
    kx, k1, k2, k3, kb1, kb2, kb3 = jax.random.split(key, 7)

    B, C_IN, C_HID, C_OUT, L, K = 2, 4, 32, 4, 16, 3

    x = jax.random.normal(kx, (B, C_IN, L), dtype=jnp.float32)
    w1 = jax.random.normal(k1, (C_HID, C_IN, K), dtype=jnp.float32) * 0.2
    w2 = jax.random.normal(k2, (C_HID, C_HID, K), dtype=jnp.float32) * 0.1
    w3 = jax.random.normal(k3, (C_OUT, C_HID, K), dtype=jnp.float32) * 0.1
    b1 = jax.random.normal(kb1, (C_HID,), dtype=jnp.float32) * 0.1
    b2 = jax.random.normal(kb2, (C_HID,), dtype=jnp.float32) * 0.1
    b3 = jax.random.normal(kb3, (C_OUT,), dtype=jnp.float32) * 0.1

    out = jax.block_until_ready(conv1d_block(x, w1, b1, w2, b2, w3, b3))
    ref = _reference(x, w1, b1, w2, b2, w3, b3)

    assert out.shape == (B, C_OUT, L)
    assert jnp.allclose(out, ref, atol=1e-4, rtol=1e-4), "mismatch vs reference"

    print("KERNEL_OK")
</pallas_src>

<mosaic_0001>
module attributes {stable_mosaic.version = 11 : i64} {
  func.func @_conv1d_block_kernel(%arg0: i32, %arg1: memref<1x4x16xf32, #tpu.memory_space<vmem>>, %arg2: memref<3x32x4xf32, #tpu.memory_space<vmem>>, %arg3: memref<32x1xf32, #tpu.memory_space<vmem>>, %arg4: memref<3x32x32xf32, #tpu.memory_space<vmem>>, %arg5: memref<32x1xf32, #tpu.memory_space<vmem>>, %arg6: memref<3x4x32xf32, #tpu.memory_space<vmem>>, %arg7: memref<4x1xf32, #tpu.memory_space<vmem>>, %arg8: memref<1x4x16xf32, #tpu.memory_space<vmem>>) attributes {dimension_semantics = [#tpu.dimension_semantics<parallel>], iteration_bounds = array<i64: 2>, scalar_prefetch = 0 : i64, scratch_operands = 0 : i64, tpu.core_type = #tpu.core_type<tc>, window_params = [{transform_indices = @transform_0, window_bounds = array<i64: 1, 4, 16>}, {pipeline_mode = #tpu.pipeline_mode<synchronous>, transform_indices = @transform_1, window_bounds = array<i64: 3, 32, 4>}, {pipeline_mode = #tpu.pipeline_mode<synchronous>, transform_indices = @transform_2, window_bounds = array<i64: 32, 1>}, {pipeline_mode = #tpu.pipeline_mode<synchronous>, transform_indices = @transform_3, window_bounds = array<i64: 3, 32, 32>}, {pipeline_mode = #tpu.pipeline_mode<synchronous>, transform_indices = @transform_4, window_bounds = array<i64: 32, 1>}, {pipeline_mode = #tpu.pipeline_mode<synchronous>, transform_indices = @transform_5, window_bounds = array<i64: 3, 4, 32>}, {pipeline_mode = #tpu.pipeline_mode<synchronous>, transform_indices = @transform_6, window_bounds = array<i64: 4, 1>}, {transform_indices = @transform_7, window_bounds = array<i64: 1, 4, 16>}]} {
    %c0 = arith.constant 0 : index
    %c0_0 = arith.constant 0 : index
    %c0_1 = arith.constant 0 : index
    %0 = vector.load %arg1[%c0, %c0_0, %c0_1] : memref<1x4x16xf32, #tpu.memory_space<vmem>>, vector<1x4x16xf32>
    %c0_2 = arith.constant 0 : index
    %c0_3 = arith.constant 0 : index
    %c0_4 = arith.constant 0 : index
    %1 = vector.load %arg2[%c0_2, %c0_3, %c0_4] : memref<3x32x4xf32, #tpu.memory_space<vmem>>, vector<1x32x4xf32>
    %2 = vector.shape_cast %1 : vector<1x32x4xf32> to vector<32x4xf32>
    %3 = vector.shape_cast %2 : vector<32x4xf32> to vector<1x32x4xf32>
    %c1_i32 = arith.constant 1 : i32
    %4 = tpu.dynamic_rotate %0 by %c1_i32 dim 2 : vector<1x4x16xf32>, i32 -> vector<1x4x16xf32>
    %5 = tpu.iota {dimensions = array<i32: 2>} : vector<1x4x16xi32>
    %c-1_i32 = arith.constant -1 : i32
    %6 = vector.broadcast %c-1_i32 : i32 to vector<1x4x16xi32>
    %7 = arith.addi %5, %6 : vector<1x4x16xi32>
    %c0_i32 = arith.constant 0 : i32
    %8 = vector.broadcast %c0_i32 : i32 to vector<1x4x16xi32>
    %9 = arith.cmpi sge, %7, %8 : vector<1x4x16xi32>
    %c-1_i32_5 = arith.constant -1 : i32
    %10 = vector.broadcast %c-1_i32_5 : i32 to vector<1x4x16xi32>
    %11 = arith.addi %5, %10 : vector<1x4x16xi32>
    %c16_i32 = arith.constant 16 : i32
    %12 = vector.broadcast %c16_i32 : i32 to vector<1x4x16xi32>
    %13 = arith.cmpi slt, %11, %12 : vector<1x4x16xi32>
    %14 = arith.andi %9, %13 : vector<1x4x16xi1>
    %cst = arith.constant 0.000000e+00 : f32
    %15 = vector.broadcast %cst : f32 to vector<1x4x16xf32>
    %16 = arith.select %14, %4, %15 : vector<1x4x16xi1>, vector<1x4x16xf32>
    %cst_6 = arith.constant dense<0.000000e+00> : vector<1x32x16xf32>
    %17 = tpu.matmul %3, %16, %cst_6 {dimension_numbers = #tpu.dot_dimension_numbers<[2], [1], [1], [2], [0, 0, 0, 1, 1, 2], [0], [0]>} : vector<1x32x4xf32>, vector<1x4x16xf32>, vector<1x32x16xf32> -> vector<1x32x16xf32>
    %c1 = arith.constant 1 : index
    %c0_7 = arith.constant 0 : index
    %c0_8 = arith.constant 0 : index
    %18 = vector.load %arg2[%c1, %c0_7, %c0_8] : memref<3x32x4xf32, #tpu.memory_space<vmem>>, vector<1x32x4xf32>
    %19 = vector.shape_cast %18 : vector<1x32x4xf32> to vector<32x4xf32>
    %20 = vector.shape_cast %19 : vector<32x4xf32> to vector<1x32x4xf32>
    %cst_9 = arith.constant dense<0.000000e+00> : vector<1x32x16xf32>
    %21 = tpu.matmul %20, %0, %cst_9 {dimension_numbers = #tpu.dot_dimension_numbers<[2], [1], [1], [2], [0, 0, 0, 1, 1, 2], [0], [0]>} : vector<1x32x4xf32>, vector<1x4x16xf32>, vector<1x32x16xf32> -> vector<1x32x16xf32>
    %22 = arith.addf %17, %21 : vector<1x32x16xf32>
    %c2 = arith.constant 2 : index
    %c0_10 = arith.constant 0 : index
    %c0_11 = arith.constant 0 : index
    %23 = vector.load %arg2[%c2, %c0_10, %c0_11] : memref<3x32x4xf32, #tpu.memory_space<vmem>>, vector<1x32x4xf32>
    %24 = vector.shape_cast %23 : vector<1x32x4xf32> to vector<32x4xf32>
    %25 = vector.shape_cast %24 : vector<32x4xf32> to vector<1x32x4xf32>
    %c15_i32 = arith.constant 15 : i32
    %26 = tpu.dynamic_rotate %0 by %c15_i32 dim 2 : vector<1x4x16xf32>, i32 -> vector<1x4x16xf32>
    %27 = tpu.iota {dimensions = array<i32: 2>} : vector<1x4x16xi32>
    %c1_i32_12 = arith.constant 1 : i32
    %28 = vector.broadcast %c1_i32_12 : i32 to vector<1x4x16xi32>
    %29 = arith.addi %27, %28 : vector<1x4x16xi32>
    %c0_i32_13 = arith.constant 0 : i32
    %30 = vector.broadcast %c0_i32_13 : i32 to vector<1x4x16xi32>
    %31 = arith.cmpi sge, %29, %30 : vector<1x4x16xi32>
    %c1_i32_14 = arith.constant 1 : i32
    %32 = vector.broadcast %c1_i32_14 : i32 to vector<1x4x16xi32>
    %33 = arith.addi %27, %32 : vector<1x4x16xi32>
    %c16_i32_15 = arith.constant 16 : i32
    %34 = vector.broadcast %c16_i32_15 : i32 to vector<1x4x16xi32>
    %35 = arith.cmpi slt, %33, %34 : vector<1x4x16xi32>
    %36 = arith.andi %31, %35 : vector<1x4x16xi1>
    %cst_16 = arith.constant 0.000000e+00 : f32
    %37 = vector.broadcast %cst_16 : f32 to vector<1x4x16xf32>
    %38 = arith.select %36, %26, %37 : vector<1x4x16xi1>, vector<1x4x16xf32>
    %cst_17 = arith.constant dense<0.000000e+00> : vector<1x32x16xf32>
    %39 = tpu.matmul %25, %38, %cst_17 {dimension_numbers = #tpu.dot_dimension_numbers<[2], [1], [1], [2], [0, 0, 0, 1, 1, 2], [0], [0]>} : vector<1x32x4xf32>, vector<1x4x16xf32>, vector<1x32x16xf32> -> vector<1x32x16xf32>
    %40 = arith.addf %22, %39 : vector<1x32x16xf32>
    %c0_18 = arith.constant 0 : index
    %c0_19 = arith.constant 0 : index
    %41 = vector.load %arg3[%c0_18, %c0_19] : memref<32x1xf32, #tpu.memory_space<vmem>>, vector<32x1xf32>
    %42 = vector.shape_cast %41 : vector<32x1xf32> to vector<1x32x1xf32>
    %43 = vector.broadcast %42 : vector<1x32x1xf32> to vector<1x32x16xf32>
    %44 = arith.addf %40, %43 : vector<1x32x16xf32>
    %cst_20 = arith.constant 0.000000e+00 : f32
    %45 = vector.broadcast %cst_20 : f32 to vector<1x32x16xf32>
    %46 = arith.cmpf ogt, %44, %45 : vector<1x32x16xf32>
    %47 = math.exp %44 : vector<1x32x16xf32>
    %cst_21 = arith.constant 1.000000e+00 : f32
    %48 = vector.broadcast %cst_21 : f32 to vector<1x32x16xf32>
    %49 = arith.subf %47, %48 : vector<1x32x16xf32>
    %50 = arith.select %46, %44, %49 : vector<1x32x16xi1>, vector<1x32x16xf32>
    %c0_22 = arith.constant 0 : index
    %c0_23 = arith.constant 0 : index
    %c0_24 = arith.constant 0 : index
    %51 = vector.load %arg4[%c0_22, %c0_23, %c0_24] : memref<3x32x32xf32, #tpu.memory_space<vmem>>, vector<1x32x32xf32>
    %52 = vector.shape_cast %51 : vector<1x32x32xf32> to vector<32x32xf32>
    %53 = vector.shape_cast %52 : vector<32x32xf32> to vector<1x32x32xf32>
    %c1_i32_25 = arith.constant 1 : i32
    %54 = tpu.dynamic_rotate %50 by %c1_i32_25 dim 2 : vector<1x32x16xf32>, i32 -> vector<1x32x16xf32>
    %55 = tpu.iota {dimensions = array<i32: 2>} : vector<1x32x16xi32>
    %c-1_i32_26 = arith.constant -1 : i32
    %56 = vector.broadcast %c-1_i32_26 : i32 to vector<1x32x16xi32>
    %57 = arith.addi %55, %56 : vector<1x32x16xi32>
    %c0_i32_27 = arith.constant 0 : i32
    %58 = vector.broadcast %c0_i32_27 : i32 to vector<1x32x16xi32>
    %59 = arith.cmpi sge, %57, %58 : vector<1x32x16xi32>
    %c-1_i32_28 = arith.constant -1 : i32
    %60 = vector.broadcast %c-1_i32_28 : i32 to vector<1x32x16xi32>
    %61 = arith.addi %55, %60 : vector<1x32x16xi32>
    %c16_i32_29 = arith.constant 16 : i32
    %62 = vector.broadcast %c16_i32_29 : i32 to vector<1x32x16xi32>
    %63 = arith.cmpi slt, %61, %62 : vector<1x32x16xi32>
    %64 = arith.andi %59, %63 : vector<1x32x16xi1>
    %cst_30 = arith.constant 0.000000e+00 : f32
    %65 = vector.broadcast %cst_30 : f32 to vector<1x32x16xf32>
    %66 = arith.select %64, %54, %65 : vector<1x32x16xi1>, vector<1x32x16xf32>
    %cst_31 = arith.constant dense<0.000000e+00> : vector<1x32x16xf32>
    %67 = tpu.matmul %53, %66, %cst_31 {dimension_numbers = #tpu.dot_dimension_numbers<[2], [1], [1], [2], [0, 0, 0, 1, 1, 2], [0], [0]>} : vector<1x32x32xf32>, vector<1x32x16xf32>, vector<1x32x16xf32> -> vector<1x32x16xf32>
    %c1_32 = arith.constant 1 : index
    %c0_33 = arith.constant 0 : index
    %c0_34 = arith.constant 0 : index
    %68 = vector.load %arg4[%c1_32, %c0_33, %c0_34] : memref<3x32x32xf32, #tpu.memory_space<vmem>>, vector<1x32x32xf32>
    %69 = vector.shape_cast %68 : vector<1x32x32xf32> to vector<32x32xf32>
    %70 = vector.shape_cast %69 : vector<32x32xf32> to vector<1x32x32xf32>
    %cst_35 = arith.constant dense<0.000000e+00> : vector<1x32x16xf32>
    %71 = tpu.matmul %70, %50, %cst_35 {dimension_numbers = #tpu.dot_dimension_numbers<[2], [1], [1], [2], [0, 0, 0, 1, 1, 2], [0], [0]>} : vector<1x32x32xf32>, vector<1x32x16xf32>, vector<1x32x16xf32> -> vector<1x32x16xf32>
    %72 = arith.addf %67, %71 : vector<1x32x16xf32>
    %c2_36 = arith.constant 2 : index
    %c0_37 = arith.constant 0 : index
    %c0_38 = arith.constant 0 : index
    %73 = vector.load %arg4[%c2_36, %c0_37, %c0_38] : memref<3x32x32xf32, #tpu.memory_space<vmem>>, vector<1x32x32xf32>
    %74 = vector.shape_cast %73 : vector<1x32x32xf32> to vector<32x32xf32>
    %75 = vector.shape_cast %74 : vector<32x32xf32> to vector<1x32x32xf32>
    %c15_i32_39 = arith.constant 15 : i32
    %76 = tpu.dynamic_rotate %50 by %c15_i32_39 dim 2 : vector<1x32x16xf32>, i32 -> vector<1x32x16xf32>
    %77 = tpu.iota {dimensions = array<i32: 2>} : vector<1x32x16xi32>
    %c1_i32_40 = arith.constant 1 : i32
    %78 = vector.broadcast %c1_i32_40 : i32 to vector<1x32x16xi32>
    %79 = arith.addi %77, %78 : vector<1x32x16xi32>
    %c0_i32_41 = arith.constant 0 : i32
    %80 = vector.broadcast %c0_i32_41 : i32 to vector<1x32x16xi32>
    %81 = arith.cmpi sge, %79, %80 : vector<1x32x16xi32>
    %c1_i32_42 = arith.constant 1 : i32
    %82 = vector.broadcast %c1_i32_42 : i32 to vector<1x32x16xi32>
    %83 = arith.addi %77, %82 : vector<1x32x16xi32>
    %c16_i32_43 = arith.constant 16 : i32
    %84 = vector.broadcast %c16_i32_43 : i32 to vector<1x32x16xi32>
    %85 = arith.cmpi slt, %83, %84 : vector<1x32x16xi32>
    %86 = arith.andi %81, %85 : vector<1x32x16xi1>
    %cst_44 = arith.constant 0.000000e+00 : f32
    %87 = vector.broadcast %cst_44 : f32 to vector<1x32x16xf32>
    %88 = arith.select %86, %76, %87 : vector<1x32x16xi1>, vector<1x32x16xf32>
    %cst_45 = arith.constant dense<0.000000e+00> : vector<1x32x16xf32>
    %89 = tpu.matmul %75, %88, %cst_45 {dimension_numbers = #tpu.dot_dimension_numbers<[2], [1], [1], [2], [0, 0, 0, 1, 1, 2], [0], [0]>} : vector<1x32x32xf32>, vector<1x32x16xf32>, vector<1x32x16xf32> -> vector<1x32x16xf32>
    %90 = arith.addf %72, %89 : vector<1x32x16xf32>
    %c0_46 = arith.constant 0 : index
    %c0_47 = arith.constant 0 : index
    %91 = vector.load %arg5[%c0_46, %c0_47] : memref<32x1xf32, #tpu.memory_space<vmem>>, vector<32x1xf32>
    %92 = vector.shape_cast %91 : vector<32x1xf32> to vector<1x32x1xf32>
    %93 = vector.broadcast %92 : vector<1x32x1xf32> to vector<1x32x16xf32>
    %94 = arith.addf %90, %93 : vector<1x32x16xf32>
    %cst_48 = arith.constant 0.000000e+00 : f32
    %95 = vector.broadcast %cst_48 : f32 to vector<1x32x16xf32>
    %96 = arith.cmpf ogt, %94, %95 : vector<1x32x16xf32>
    %97 = math.exp %94 : vector<1x32x16xf32>
    %cst_49 = arith.constant 1.000000e+00 : f32
    %98 = vector.broadcast %cst_49 : f32 to vector<1x32x16xf32>
    %99 = arith.subf %97, %98 : vector<1x32x16xf32>
    %100 = arith.select %96, %94, %99 : vector<1x32x16xi1>, vector<1x32x16xf32>
    %c0_50 = arith.constant 0 : index
    %c0_51 = arith.constant 0 : index
    %c0_52 = arith.constant 0 : index
    %101 = vector.load %arg6[%c0_50, %c0_51, %c0_52] : memref<3x4x32xf32, #tpu.memory_space<vmem>>, vector<1x4x32xf32>
    %102 = vector.shape_cast %101 : vector<1x4x32xf32> to vector<4x32xf32>
    %103 = vector.shape_cast %102 : vector<4x32xf32> to vector<1x4x32xf32>
    %c1_i32_53 = arith.constant 1 : i32
    %104 = tpu.dynamic_rotate %100 by %c1_i32_53 dim 2 : vector<1x32x16xf32>, i32 -> vector<1x32x16xf32>
    %105 = tpu.iota {dimensions = array<i32: 2>} : vector<1x32x16xi32>
    %c-1_i32_54 = arith.constant -1 : i32
    %106 = vector.broadcast %c-1_i32_54 : i32 to vector<1x32x16xi32>
    %107 = arith.addi %105, %106 : vector<1x32x16xi32>
    %c0_i32_55 = arith.constant 0 : i32
    %108 = vector.broadcast %c0_i32_55 : i32 to vector<1x32x16xi32>
    %109 = arith.cmpi sge, %107, %108 : vector<1x32x16xi32>
    %c-1_i32_56 = arith.constant -1 : i32
    %110 = vector.broadcast %c-1_i32_56 : i32 to vector<1x32x16xi32>
    %111 = arith.addi %105, %110 : vector<1x32x16xi32>
    %c16_i32_57 = arith.constant 16 : i32
    %112 = vector.broadcast %c16_i32_57 : i32 to vector<1x32x16xi32>
    %113 = arith.cmpi slt, %111, %112 : vector<1x32x16xi32>
    %114 = arith.andi %109, %113 : vector<1x32x16xi1>
    %cst_58 = arith.constant 0.000000e+00 : f32
    %115 = vector.broadcast %cst_58 : f32 to vector<1x32x16xf32>
    %116 = arith.select %114, %104, %115 : vector<1x32x16xi1>, vector<1x32x16xf32>
    %cst_59 = arith.constant dense<0.000000e+00> : vector<1x4x16xf32>
    %117 = tpu.matmul %103, %116, %cst_59 {dimension_numbers = #tpu.dot_dimension_numbers<[2], [1], [1], [2], [0, 0, 0, 1, 1, 2], [0], [0]>} : vector<1x4x32xf32>, vector<1x32x16xf32>, vector<1x4x16xf32> -> vector<1x4x16xf32>
    %c1_60 = arith.constant 1 : index
    %c0_61 = arith.constant 0 : index
    %c0_62 = arith.constant 0 : index
    %118 = vector.load %arg6[%c1_60, %c0_61, %c0_62] : memref<3x4x32xf32, #tpu.memory_space<vmem>>, vector<1x4x32xf32>
    %119 = vector.shape_cast %118 : vector<1x4x32xf32> to vector<4x32xf32>
    %120 = vector.shape_cast %119 : vector<4x32xf32> to vector<1x4x32xf32>
    %cst_63 = arith.constant dense<0.000000e+00> : vector<1x4x16xf32>
    %121 = tpu.matmul %120, %100, %cst_63 {dimension_numbers = #tpu.dot_dimension_numbers<[2], [1], [1], [2], [0, 0, 0, 1, 1, 2], [0], [0]>} : vector<1x4x32xf32>, vector<1x32x16xf32>, vector<1x4x16xf32> -> vector<1x4x16xf32>
    %122 = arith.addf %117, %121 : vector<1x4x16xf32>
    %c2_64 = arith.constant 2 : index
    %c0_65 = arith.constant 0 : index
    %c0_66 = arith.constant 0 : index
    %123 = vector.load %arg6[%c2_64, %c0_65, %c0_66] : memref<3x4x32xf32, #tpu.memory_space<vmem>>, vector<1x4x32xf32>
    %124 = vector.shape_cast %123 : vector<1x4x32xf32> to vector<4x32xf32>
    %125 = vector.shape_cast %124 : vector<4x32xf32> to vector<1x4x32xf32>
    %c15_i32_67 = arith.constant 15 : i32
    %126 = tpu.dynamic_rotate %100 by %c15_i32_67 dim 2 : vector<1x32x16xf32>, i32 -> vector<1x32x16xf32>
    %127 = tpu.iota {dimensions = array<i32: 2>} : vector<1x32x16xi32>
    %c1_i32_68 = arith.constant 1 : i32
    %128 = vector.broadcast %c1_i32_68 : i32 to vector<1x32x16xi32>
    %129 = arith.addi %127, %128 : vector<1x32x16xi32>
    %c0_i32_69 = arith.constant 0 : i32
    %130 = vector.broadcast %c0_i32_69 : i32 to vector<1x32x16xi32>
    %131 = arith.cmpi sge, %129, %130 : vector<1x32x16xi32>
    %c1_i32_70 = arith.constant 1 : i32
    %132 = vector.broadcast %c1_i32_70 : i32 to vector<1x32x16xi32>
    %133 = arith.addi %127, %132 : vector<1x32x16xi32>
    %c16_i32_71 = arith.constant 16 : i32
    %134 = vector.broadcast %c16_i32_71 : i32 to vector<1x32x16xi32>
    %135 = arith.cmpi slt, %133, %134 : vector<1x32x16xi32>
    %136 = arith.andi %131, %135 : vector<1x32x16xi1>
    %cst_72 = arith.constant 0.000000e+00 : f32
    %137 = vector.broadcast %cst_72 : f32 to vector<1x32x16xf32>
    %138 = arith.select %136, %126, %137 : vector<1x32x16xi1>, vector<1x32x16xf32>
    %cst_73 = arith.constant dense<0.000000e+00> : vector<1x4x16xf32>
    %139 = tpu.matmul %125, %138, %cst_73 {dimension_numbers = #tpu.dot_dimension_numbers<[2], [1], [1], [2], [0, 0, 0, 1, 1, 2], [0], [0]>} : vector<1x4x32xf32>, vector<1x32x16xf32>, vector<1x4x16xf32> -> vector<1x4x16xf32>
    %140 = arith.addf %122, %139 : vector<1x4x16xf32>
    %c0_74 = arith.constant 0 : index
    %c0_75 = arith.constant 0 : index
    %141 = vector.load %arg7[%c0_74, %c0_75] : memref<4x1xf32, #tpu.memory_space<vmem>>, vector<4x1xf32>
    %142 = vector.shape_cast %141 : vector<4x1xf32> to vector<1x4x1xf32>
    %143 = vector.broadcast %142 : vector<1x4x1xf32> to vector<1x4x16xf32>
    %144 = arith.addf %140, %143 : vector<1x4x16xf32>
    %c0_76 = arith.constant 0 : index
    %c0_77 = arith.constant 0 : index
    %c0_78 = arith.constant 0 : index
    %145 = vector.load %arg8[%c0_76, %c0_77, %c0_78] : memref<1x4x16xf32, #tpu.memory_space<vmem>>, vector<1x4x16xf32>
    tpu.vector_store %arg8[%c0_76, %c0_77, %c0_78], %144 {strides = array<i32>} : memref<1x4x16xf32, #tpu.memory_space<vmem>>, vector<1x4x16xf32>,
    return
  }
  func.func @transform_0(%arg0: i32) -> (i32, i32, i32) {
    %c0_i32 = arith.constant 0 : i32
    %c0_i32_0 = arith.constant 0 : i32
    %c0_i32_1 = arith.constant 0 : i32
    return %arg0, %c0_i32, %c0_i32_0 : i32, i32, i32
  }
  func.func @transform_1(%arg0: i32) -> (i32, i32, i32) {
    %c0_i32 = arith.constant 0 : i32
    %c0_i32_0 = arith.constant 0 : i32
    %c0_i32_1 = arith.constant 0 : i32
    %c0_i32_2 = arith.constant 0 : i32
    return %c0_i32, %c0_i32_0, %c0_i32_1 : i32, i32, i32
  }
  func.func @transform_2(%arg0: i32) -> (i32, i32) {
    %c0_i32 = arith.constant 0 : i32
    %c0_i32_0 = arith.constant 0 : i32
    %c0_i32_1 = arith.constant 0 : i32
    return %c0_i32, %c0_i32_0 : i32, i32
  }
  func.func @transform_3(%arg0: i32) -> (i32, i32, i32) {
    %c0_i32 = arith.constant 0 : i32
    %c0_i32_0 = arith.constant 0 : i32
    %c0_i32_1 = arith.constant 0 : i32
    %c0_i32_2 = arith.constant 0 : i32
    return %c0_i32, %c0_i32_0, %c0_i32_1 : i32, i32, i32
  }
  func.func @transform_4(%arg0: i32) -> (i32, i32) {
    %c0_i32 = arith.constant 0 : i32
    %c0_i32_0 = arith.constant 0 : i32
    %c0_i32_1 = arith.constant 0 : i32
    return %c0_i32, %c0_i32_0 : i32, i32
  }
  func.func @transform_5(%arg0: i32) -> (i32, i32, i32) {
    %c0_i32 = arith.constant 0 : i32
    %c0_i32_0 = arith.constant 0 : i32
    %c0_i32_1 = arith.constant 0 : i32
    %c0_i32_2 = arith.constant 0 : i32
    return %c0_i32, %c0_i32_0, %c0_i32_1 : i32, i32, i32
  }
  func.func @transform_6(%arg0: i32) -> (i32, i32) {
    %c0_i32 = arith.constant 0 : i32
    %c0_i32_0 = arith.constant 0 : i32
    %c0_i32_1 = arith.constant 0 : i32
    return %c0_i32, %c0_i32_0 : i32, i32
  }
  func.func @transform_7(%arg0: i32) -> (i32, i32, i32) {
    %c0_i32 = arith.constant 0 : i32
    %c0_i32_0 = arith.constant 0 : i32
    %c0_i32_1 = arith.constant 0 : i32
    return %arg0, %c0_i32, %c0_i32_0 : i32, i32, i32
  }
}

</mosaic_0001>

<llo_original>
// kernel: tpu_custom_call.1
$region0: #{tpu_custom_call.1}
  #allocation0 [shape = 'u32[]', space=smem, size = 0x4, offset = 0x4, fixed_abs, tag = 'smem constant byte address 0x4 - core index']
  #allocation1 [shape = 'u32[72,128]{1,0:T(1,128)}', space=vmem, size = 0x9000, scoped, tag = 'internal scratch']
  %s0 = inlined_call_operand.vmem [shape: f32[2,4,16], index: 0, kind: input, shape index: {}]
  %s1 = inlined_call_operand.vmem [shape: f32[3,32,4], index: 1, kind: input, shape index: {}]
  %s2 = inlined_call_operand.vmem [shape: f32[32,1], index: 2, kind: input, shape index: {}]
  %s3 = inlined_call_operand.vmem [shape: f32[3,32,32], index: 3, kind: input, shape index: {}]
  %s4 = inlined_call_operand.vmem [shape: f32[32,1], index: 4, kind: input, shape index: {}]
  %s5 = inlined_call_operand.vmem [shape: f32[3,4,32], index: 5, kind: input, shape index: {}]
  %s6 = inlined_call_operand.vmem [shape: f32[4,1], index: 6, kind: input, shape index: {}]
  %s7 = inlined_call_operand.hbm [shape: f32[2,4,16], index: 7, kind: output, shape index: {}]
  %s8 = sld [smem:[#allocation0]]
  $region61: #{tpu_custom_call.1} parent=0
    _
  %s10 = ssub.s32 1, %s8
  %s11 = scalar_select 0, %s10, %s8
  $region1: #{tpu_custom_call.1} parent=0
    #allocation2 [shape = 'u8[4096]{0}', space=vmem, size = 0x1000, scoped, tag = 'output window, operand 0']
    #allocation3 [shape = 's32[2]{0}', space=sflag, size = 0x8, scoped, tag = 'scoped memory for tpu_custom_call.1']
    %12 = vsyncpa [#allocation3], 0
    %s13 = scalar_lea.sflag [#allocation3], 1
    %14 = vsyncpa %s13, 0
    loop: start=0, step=1, limit=4
    $region2: #{tpu_custom_call.1} parent=1 // loop_pre_header
      _
    $region3: #{tpu_custom_call.1} parent=1 // loop_header
      %s16 = sphi 0, %s20
      %p17 = scmp.ge.s32.totalorder %s16, 4
      %s26 = sphi 0, %s28
      %s29 = sphi 0, %s26
      %s30 = sphi 0, %s29
      %s46 = sphi 0, %s30
      %s50 = sphi 0, %s50
      %s52 = sphi 0, %s50
      %s53 = sphi 0, %s52
      %s67 = sphi 0, %s53
      %s71 = sphi 0, %s71
      %s73 = sphi 0, %s71
      %s74 = sphi 0, %s73
      %s88 = sphi 0, %s74
      %s92 = sphi 0, %s92
      %s94 = sphi 0, %s92
      %s95 = sphi 0, %s94
      %s109 = sphi 0, %s95
      %s113 = sphi 0, %s113
      %s115 = sphi 0, %s113
      %s116 = sphi 0, %s115
      %s130 = sphi 0, %s116
      %s134 = sphi 0, %s134
      %s136 = sphi 0, %s134
      %s137 = sphi 0, %s136
      %s151 = sphi 0, %s137
      %s155 = sphi 0, %s155
      %s157 = sphi 0, %s155
      %s158 = sphi 0, %s157
      %s172 = sphi 0, %s158
      %s178 = sphi 0, %s180
      %s181 = sphi 0, %s178
      %s182 = sphi 0, %s181
      %s198 = sphi 0, %s182
    $region4: #{tpu_custom_call.1} parent=1 // loop_header_branch
      %19 = sbr.rel (%p17) target = $region8
    $region5: #{tpu_custom_call.1} parent=1 // loop_body
      %s21 = ssub.s32 %s16, 1
      %s22 = ssub.s32 %s16, 2
      %s23 = sadd.s32 %s16, 1
      %s24 = ssub.s32 %s16, %s23
      %p25 = scmp.eq.s32.totalorder %s24, 0
      %s27 = sadd.s32 %s26, 1
      %s28 = scalar_select %p25, %s26, %s27
      %p31 = pneg %p25
      %p32 = scmp.eq.s32.totalorder %s16, 1
      %p33 = por %p31, %p32
      %p34 = scmp.ne.s32.totalorder %s26, %s29
      %p35 = scmp.eq.s32.totalorder %s16, 0
      %p36 = por %p34, %p35
      %p37 = scmp.ne.s32.totalorder %s26, %s29
      %p38 = scmp.eq.s32.totalorder %s21, 1
      %p39 = por %p37, %p38
      %p40 = scmp.ne.s32.totalorder %s29, %s30
      %p41 = scmp.eq.s32.totalorder %s21, 0
      %p42 = por %p40, %p41
      %p43 = scmp.ne.s32.totalorder %s29, %s30
      %p44 = scmp.eq.s32.totalorder %s22, 1
      %p45 = por %p43, %p44
      %p47 = scmp.ne.s32.totalorder %s30, %s46
      %p48 = scmp.eq.s32.totalorder %s22, 0
      %p49 = por %p47, %p48
      %s51 = sadd.s32 %s50, 1
      %p54 = scmp.eq.s32.totalorder %s16, 1
      %p55 = scmp.ne.s32.totalorder %s50, %s52
      %p56 = scmp.eq.s32.totalorder %s16, 0
      %p57 = por %p55, %p56
      %p58 = scmp.ne.s32.totalorder %s50, %s52
      %p59 = scmp.eq.s32.totalorder %s21, 1
      %p60 = por %p58, %p59
      %p61 = scmp.ne.s32.totalorder %s52, %s53
      %p62 = scmp.eq.s32.totalorder %s21, 0
      %p63 = por %p61, %p62
      %p64 = scmp.ne.s32.totalorder %s52, %s53
      %p65 = scmp.eq.s32.totalorder %s22, 1
      %p66 = por %p64, %p65
      %p68 = scmp.ne.s32.totalorder %s53, %s67
      %p69 = scmp.eq.s32.totalorder %s22, 0
      %p70 = por %p68, %p69
      %s72 = sadd.s32 %s71, 1
      %p75 = scmp.eq.s32.totalorder %s16, 1
      %p76 = scmp.ne.s32.totalorder %s71, %s73
      %p77 = scmp.eq.s32.totalorder %s16, 0
      %p78 = por %p76, %p77
      %p79 = scmp.ne.s32.totalorder %s71, %s73
      %p80 = scmp.eq.s32.totalorder %s21, 1
      %p81 = por %p79, %p80
      %p82 = scmp.ne.s32.totalorder %s73, %s74
      %p83 = scmp.eq.s32.totalorder %s21, 0
      %p84 = por %p82, %p83
      %p85 = scmp.ne.s32.totalorder %s73, %s74
      %p86 = scmp.eq.s32.totalorder %s22, 1
      %p87 = por %p85, %p86
      %p89 = scmp.ne.s32.totalorder %s74, %s88
      %p90 = scmp.eq.s32.totalorder %s22, 0
      %p91 = por %p89, %p90
      %s93 = sadd.s32 %s92, 1
      %p96 = scmp.eq.s32.totalorder %s16, 1
      %p97 = scmp.ne.s32.totalorder %s92, %s94
      %p98 = scmp.eq.s32.totalorder %s16, 0
      %p99 = por %p97, %p98
      %p100 = scmp.ne.s32.totalorder %s92, %s94
      %p101 = scmp.eq.s32.totalorder %s21, 1
      %p102 = por %p100, %p101
      %p103 = scmp.ne.s32.totalorder %s94, %s95
      %p104 = scmp.eq.s32.totalorder %s21, 0
      %p105 = por %p103, %p104
      %p106 = scmp.ne.s32.totalorder %s94, %s95
      %p107 = scmp.eq.s32.totalorder %s22, 1
      %p108 = por %p106, %p107
      %p110 = scmp.ne.s32.totalorder %s95, %s109
      %p111 = scmp.eq.s32.totalorder %s22, 0
      %p112 = por %p110, %p111
      %s114 = sadd.s32 %s113, 1
      %p117 = scmp.eq.s32.totalorder %s16, 1
      %p118 = scmp.ne.s32.totalorder %s113, %s115
      %p119 = scmp.eq.s32.totalorder %s16, 0
      %p120 = por %p118, %p119
      %p121 = scmp.ne.s32.totalorder %s113, %s115
      %p122 = scmp.eq.s32.totalorder %s21, 1
      %p123 = por %p121, %p122
      %p124 = scmp.ne.s32.totalorder %s115, %s116
      %p125 = scmp.eq.s32.totalorder %s21, 0
      %p126 = por %p124, %p125
      %p127 = scmp.ne.s32.totalorder %s115, %s116
      %p128 = scmp.eq.s32.totalorder %s22, 1
      %p129 = por %p127, %p128
      %p131 = scmp.ne.s32.totalorder %s116, %s130
      %p132 = scmp.eq.s32.totalorder %s22, 0
      %p133 = por %p131, %p132
      %s135 = sadd.s32 %s134, 1
      %p138 = scmp.eq.s32.totalorder %s16, 1
      %p139 = scmp.ne.s32.totalorder %s134, %s136
      %p140 = scmp.eq.s32.totalorder %s16, 0
      %p141 = por %p139, %p140
      %p142 = scmp.ne.s32.totalorder %s134, %s136
      %p143 = scmp.eq.s32.totalorder %s21, 1
      %p144 = por %p142, %p143
      %p145 = scmp.ne.s32.totalorder %s136, %s137
      %p146 = scmp.eq.s32.totalorder %s21, 0
      %p147 = por %p145, %p146
      %p148 = scmp.ne.s32.totalorder %s136, %s137
      %p149 = scmp.eq.s32.totalorder %s22, 1
      %p150 = por %p148, %p149
      %p152 = scmp.ne.s32.totalorder %s137, %s151
      %p153 = scmp.eq.s32.totalorder %s22, 0
      %p154 = por %p152, %p153
      %s156 = sadd.s32 %s155, 1
      %p159 = scmp.eq.s32.totalorder %s16, 1
      %p160 = scmp.ne.s32.totalorder %s155, %s157
      %p161 = scmp.eq.s32.totalorder %s16, 0
      %p162 = por %p160, %p161
      %p163 = scmp.ne.s32.totalorder %s155, %s157
      %p164 = scmp.eq.s32.totalorder %s21, 1
      %p165 = por %p163, %p164
      %p166 = scmp.ne.s32.totalorder %s157, %s158
      %p167 = scmp.eq.s32.totalorder %s21, 0
      %p168 = por %p166, %p167
      %p169 = scmp.ne.s32.totalorder %s157, %s158
      %p170 = scmp.eq.s32.totalorder %s22, 1
      %p171 = por %p169, %p170
      %p173 = scmp.ne.s32.totalorder %s158, %s172
      %p174 = scmp.eq.s32.totalorder %s22, 0
      %p175 = por %p173, %p174
      %s176 = ssub.s32 %s16, %s23
      %p177 = scmp.eq.s32.totalorder %s176, 0
      %s179 = sadd.s32 %s178, 1
      %s180 = scalar_select %p177, %s178, %s179
      %p183 = pneg %p177
      %p184 = scmp.eq.s32.totalorder %s16, 1
      %p185 = por %p183, %p184
      %p186 = scmp.ne.s32.totalorder %s178, %s181
      %p187 = scmp.eq.s32.totalorder %s16, 0
      %p188 = por %p186, %p187
      %p189 = scmp.ne.s32.totalorder %s178, %s181
      %p190 = scmp.eq.s32.totalorder %s21, 1
      %p191 = por %p189, %p190
      %p192 = scmp.ne.s32.totalorder %s181, %s182
      %p193 = scmp.eq.s32.totalorder %s21, 0
      %p194 = por %p192, %p193
      %p195 = scmp.ne.s32.totalorder %s181, %s182
      %p196 = scmp.eq.s32.totalorder %s22, 1
      %p197 = por %p195, %p196
      %p199 = scmp.ne.s32.totalorder %s182, %s198
      %p200 = scmp.eq.s32.totalorder %s22, 0
      %p201 = por %p199, %p200
      %p202 = scmp.le.s32.totalorder 1, %s16
      %p203 = scmp.lt.s32.totalorder %s16, 3
      %p204 = pnand %p202, %p203
      %p205 = pneg %p204
      // Predicated region
      $region9: #{tpu_custom_call.1} parent=5 // pred_check
        _
      $region10: #{tpu_custom_call.1} parent=5 // pred_check_branch
        %207 = sbr.rel (%p204) target = $region12
      $region11: #{tpu_custom_call.1} parent=5 // pred_region
        %s208 = ssub.s32 %s16, 1
        // Predicated region
        $region13: #{tpu_custom_call.1} parent=11 // pred_check
          %p209 = pneg %p63
        $region14: #{tpu_custom_call.1} parent=11 // pred_check_branch
          %211 = sbr.rel (%p209) target = $region16
        $region15: #{tpu_custom_call.1} parent=11 // pred_region
          _
        $region16: #{tpu_custom_call.1} parent=11 // pred_fallthru
          _
        // Predicated region
        $region17: #{tpu_custom_call.1} parent=11 // pred_check
          %p212 = pneg %p84
        $region18: #{tpu_custom_call.1} parent=11 // pred_check_branch
          %214 = sbr.rel (%p212) target = $region20
        $region19: #{tpu_custom_call.1} parent=11 // pred_region
          _
        $region20: #{tpu_custom_call.1} parent=11 // pred_fallthru
          _
        // Predicated region
        $region21: #{tpu_custom_call.1} parent=11 // pred_check
          %p215 = pneg %p105
        $region22: #{tpu_custom_call.1} parent=11 // pred_check_branch
          %217 = sbr.rel (%p215) target = $region24
        $region23: #{tpu_custom_call.1} parent=11 // pred_region
          _
        $region24: #{tpu_custom_call.1} parent=11 // pred_fallthru
          _
        // Predicated region
        $region25: #{tpu_custom_call.1} parent=11 // pred_check
          %p218 = pneg %p126
        $region26: #{tpu_custom_call.1} parent=11 // pred_check_branch
          %220 = sbr.rel (%p218) target = $region28
        $region27: #{tpu_custom_call.1} parent=11 // pred_region
          _
        $region28: #{tpu_custom_call.1} parent=11 // pred_fallthru
          _
        // Predicated region
        $region29: #{tpu_custom_call.1} parent=11 // pred_check
          %p221 = pneg %p147
        $region30: #{tpu_custom_call.1} parent=11 // pred_check_branch
          %223 = sbr.rel (%p221) target = $region32
        $region31: #{tpu_custom_call.1} parent=11 // pred_region
          _
        $region32: #{tpu_custom_call.1} parent=11 // pred_fallthru
          _
        // Predicated region
        $region33: #{tpu_custom_call.1} parent=11 // pred_check
          %p224 = pneg %p168
        $region34: #{tpu_custom_call.1} parent=11 // pred_check_branch
          %226 = sbr.rel (%p224) target = $region36
        $region35: #{tpu_custom_call.1} parent=11 // pred_region
          _
        $region36: #{tpu_custom_call.1} parent=11 // pred_fallthru
          _
      $region12: #{tpu_custom_call.1} parent=5 // pred_fallthru
        _
      %p227 = scmp.lt.s32.totalorder %s16, 2
      // Predicated region
      $region37: #{tpu_custom_call.1} parent=5 // pred_check
        %p228 = pneg %p227
      $region38: #{tpu_custom_call.1} parent=5 // pred_check_branch
        %230 = sbr.rel (%p228) target = $region40
      $region39: #{tpu_custom_call.1} parent=5 // pred_region
        // Predicated region
        $region41: #{tpu_custom_call.1} parent=39 // pred_check
          %p231 = pneg %p36
        $region42: #{tpu_custom_call.1} parent=39 // pred_check_branch
          %233 = sbr.rel (%p231) target = $region44
        $region43: #{tpu_custom_call.1} parent=39 // pred_region
          %p234 = scmp.lt.s32.totalorder %s16, 1
          %s235 = scalar_select %p234, %s16, 1
          %s236 = smul.addr %s235, 4
          %s237 = scalar_lea.vmem %s0, %s236
        $region44: #{tpu_custom_call.1} parent=39 // pred_fallthru
          _
      $region40: #{tpu_custom_call.1} parent=5 // pred_fallthru
        _
      %p238 = scmp.le.s32.totalorder 1, %s16
      %p239 = scmp.lt.s32.totalorder %s16, 3
      %p240 = pnand %p238, %p239
      %p241 = pneg %p240
      // Predicated region
      $region45: #{tpu_custom_call.1} parent=5 // pred_check
        _
      $region46: #{tpu_custom_call.1} parent=5 // pred_check_branch
        %243 = sbr.rel (%p240) target = $region48
      $region47: #{tpu_custom_call.1} parent=5 // pred_region
        %s244 = ssub.s32 %s16, 1
        %p245 = scmp.lt.s32.totalorder %s21, 1
        %s246 = scalar_select %p245, %s21, 1
        %s247 = smul.addr %s246, 4
        %s248 = scalar_lea.vmem %s0, %s247
        %p249 = pneg %p42
        %p250 = pneg %p39
        %p251 = pneg %p63
        %p252 = pneg %p60
        %p253 = pneg %p84
        %p254 = pneg %p81
        %p255 = pneg %p105
        %p256 = pneg %p102
        %p257 = pneg %p126
        %p258 = pneg %p123
        %p259 = pneg %p147
        %p260 = pneg %p144
        %p261 = pneg %p168
        %p262 = pneg %p165
        %p263 = pneg %p194
        %p264 = pneg %p191
        %s265 = sand.u32 %s181, 1
        %s266 = scalar_lea.sflag [#allocation3], %s265
        %s267 = sand.u32 %s181, 1
        %s268 = smul.addr %s267, 4
        %s269 = scalar_lea.vmem [#allocation2], %s268
        %p270 = scmp.lt.s32.totalorder %s21, 1
        %s271 = scalar_select %p270, %s21, 1
        %s272 = smul.addr %s271, 4
        %s273 = scalar_lea.vmem %s0, %s272
        %v274 = vld [vmem:[%s273] sm:$0xf]
        %v275 = vld [vmem:[%s1] sm:$0xff]
        %v276 = vld [vmem:[%s1 + $0x8] sm:$0xff]
        %v277 = vld [vmem:[%s1 + $0x10] sm:$0xff]
        %v278 = vld [vmem:[%s1 + $0x18] sm:$0xff]
        %vm279 = vcmask 1047680
        %280 = vrot.lane.b32.xlu0 %v274, 16
        %v281 = vpop.permute.xlu0 %280
        %v282 = vsel %vm279, %v281, %v274
        %283 = vrot.lane.b32.xlu0 %v282, 16
        %v284 = vpop.permute.xlu0 %283
        %v285 = vsel %vm279, %v284, %v274
        %v286 = vlaneseq
        %v287 = vand.u32 %v286, 127
        %v288 = vadd.s32 %v287, 4294967295
        %vm289 = vcmp.ge.s32.totalorder %v288, 0
        %vm290 = vcmp.lt.s32.totalorder %v288, 16
        %vm291 = vmand %vm289, %vm290
        %293 = vrot.lane.b32.xlu0 %v285, 113
        %v294 = vpop.permute.xlu0 %293
        %v296 = vsel %vm291, %v294, 0.0
        %s297 = scalar_lea.vmem %s1, 32
        %v298 = vld [vmem:[%s297] sm:$0xff]
        %v299 = vld [vmem:[%s297 + $0x8] sm:$0xff]
        %v300 = vld [vmem:[%s297 + $0x10] sm:$0xff]
        %v301 = vld [vmem:[%s297 + $0x18] sm:$0xff]
        %vm302 = vcmask 31744
        %v304 = vsel %vm302, %v298, 0
        %v307 = vsel %vm302, %v299, 0
        %v310 = vsel %vm302, %v300, 0
        %v313 = vsel %vm302, %v301, 0
        %vm315 = vcmask 1043456
        %v317 = vsel %vm315, %v274, 0
        %319 = vmatpush.msra.mxu0 0.0
        %320 = vmatpush.msra.mxu0 0.0
        %321 = vmatpush.msra.mxu0 0.0
        %322 = vmatpush.msra.mxu0 0.0
        %323 = vmatpush.msra.mxu0 0.0
        %324 = vmatpush.msra.mxu0 0.0
        %325 = vmatpush.msra.mxu0 0.0
        %326 = vmatpush.msra.mxu0 0.0
        %327 = vmatpush.msra.mxu0 0.0
        %328 = vmatpush.msra.mxu0 0.0
        %329 = vmatpush.msra.mxu0 0.0
        %330 = vmatpush.msra.mxu0 0.0
        %331 = vmatpush.msra.mxu0 0.0
        %332 = vmatpush.msra.mxu0 0.0
        %333 = vmatpush.msra.mxu0 0.0
        %334 = vmatpush.msra.mxu0 %v317
        %335 = vmatmul.f32.gmra.mxu0 %v304
        %v336 = vpop.f32.mrf.mxu0
        %v337 = vadd.f32 0.0, %v336
        %338 = vmatmul.f32.gmra.mxu0 %v307
        %v339 = vpop.f32.mrf.mxu0
        %v340 = vadd.f32 0.0, %v339
        %341 = vmatmul.f32.gmra.mxu0 %v310
        %v342 = vpop.f32.mrf.mxu0
        %v343 = vadd.f32 0.0, %v342
        %344 = vmatmul.f32.gmra.mxu0 %v313
        %v345 = vpop.f32.mrf.mxu0
        %v346 = vadd.f32 0.0, %v345
        %347 = vdwg.mxu0
        %v349 = vsel %vm302, %v275, 0
        %v352 = vsel %vm302, %v276, 0
        %v355 = vsel %vm302, %v277, 0
        %v358 = vsel %vm302, %v278, 0
        %v361 = vsel %vm315, %v296, 0
        %363 = vmatpush.msra.mxu0 0.0
        %364 = vmatpush.msra.mxu0 0.0
        %365 = vmatpush.msra.mxu0 0.0
        %366 = vmatpush.msra.mxu0 0.0
        %367 = vmatpush.msra.mxu0 0.0
        %368 = vmatpush.msra.mxu0 0.0
        %369 = vmatpush.msra.mxu0 0.0
        %370 = vmatpush.msra.mxu0 0.0
        %371 = vmatpush.msra.mxu0 0.0
        %372 = vmatpush.msra.mxu0 0.0
        %373 = vmatpush.msra.mxu0 0.0
        %374 = vmatpush.msra.mxu0 0.0
        %375 = vmatpush.msra.mxu0 0.0
        %376 = vmatpush.msra.mxu0 0.0
        %377 = vmatpush.msra.mxu0 0.0
        %378 = vmatpush.msra.mxu0 %v361
        %379 = vmatmul.f32.gmra.mxu0 %v349
        %v380 = vpop.f32.mrf.mxu0
        %v381 = vadd.f32 %v337, %v380
        %382 = vmatmul.f32.gmra.mxu0 %v352
        %v383 = vpop.f32.mrf.mxu0
        %v384 = vadd.f32 %v340, %v383
        %385 = vmatmul.f32.gmra.mxu0 %v355
        %v386 = vpop.f32.mrf.mxu0
        %v387 = vadd.f32 %v343, %v386
        %388 = vmatmul.f32.gmra.mxu0 %v358
        %v389 = vpop.f32.mrf.mxu0
        %v390 = vadd.f32 %v346, %v389
        %391 = vdwg.mxu0
        %s392 = scalar_lea.vmem %s1, 64
        %v393 = vld [vmem:[%s392] sm:$0xff]
        %v394 = vld [vmem:[%s392 + $0x8] sm:$0xff]
        %v395 = vld [vmem:[%s392 + $0x10] sm:$0xff]
        %v396 = vld [vmem:[%s392 + $0x18] sm:$0xff]
        %v397 = vadd.s32 %v287, 1
        %vm398 = vcmp.ge.s32.totalorder %v397, 0
        %vm399 = vcmp.lt.s32.totalorder %v397, 16
        %vm400 = vmand %vm398, %vm399
        %401 = vrot.lane.b32.xlu0 %v285, 127
        %v402 = vpop.permute.xlu0 %401
        %v404 = vsel %vm400, %v402, 0.0
        %v406 = vsel %vm302, %v393, 0
        %v409 = vsel %vm302, %v394, 0
        %v412 = vsel %vm302, %v395, 0
        %v415 = vsel %vm302, %v396, 0
        %v418 = vsel %vm315, %v404, 0
        %420 = vmatpush.msra.mxu0 0.0
        %421 = vmatpush.msra.mxu0 0.0
        %422 = vmatpush.msra.mxu0 0.0
        %423 = vmatpush.msra.mxu0 0.0
        %424 = vmatpush.msra.mxu0 0.0
        %425 = vmatpush.msra.mxu0 0.0
        %426 = vmatpush.msra.mxu0 0.0
        %427 = vmatpush.msra.mxu0 0.0
        %428 = vmatpush.msra.mxu0 0.0
        %429 = vmatpush.msra.mxu0 0.0
        %430 = vmatpush.msra.mxu0 0.0
        %431 = vmatpush.msra.mxu0 0.0
        %432 = vmatpush.msra.mxu0 0.0
        %433 = vmatpush.msra.mxu0 0.0
        %434 = vmatpush.msra.mxu0 0.0
        %435 = vmatpush.msra.mxu0 %v418
        %436 = vmatmul.f32.gmra.mxu0 %v406
        %v437 = vpop.f32.mrf.mxu0
        %v438 = vadd.f32 0.0, %v437
        %439 = vmatmul.f32.gmra.mxu0 %v409
        %v440 = vpop.f32.mrf.mxu0
        %v441 = vadd.f32 0.0, %v440
        %442 = vmatmul.f32.gmra.mxu0 %v412
        %v443 = vpop.f32.mrf.mxu0
        %v444 = vadd.f32 0.0, %v443
        %445 = vmatmul.f32.gmra.mxu0 %v415
        %v446 = vpop.f32.mrf.mxu0
        %v447 = vadd.f32 0.0, %v446
        %448 = vdwg.mxu0
        %v449 = vadd.f32 %v381, %v438
        %v450 = vadd.f32 %v384, %v441
        %v451 = vadd.f32 %v387, %v444
        %v452 = vadd.f32 %v390, %v447
        %v453 = vld [vmem:[%s2] sm:$0xff]
        %v454 = vld [vmem:[%s2 + $0x8] sm:$0xff]
        %v455 = vld [vmem:[%s2 + $0x10] sm:$0xff]
        %v456 = vld [vmem:[%s2 + $0x18] sm:$0xff]
        %458 = vset.pattern.permute.xlu0 0
        %459 = vperm.xlu0 %458, %v453
        %v460 = vpop.permute.xlu0 %459
        %463 = vset.pattern.permute.xlu0 0
        %464 = vperm.xlu0 %463, %v454
        %v465 = vpop.permute.xlu0 %464
        %468 = vset.pattern.permute.xlu0 0
        %469 = vperm.xlu0 %468, %v455
        %v470 = vpop.permute.xlu0 %469
        %473 = vset.pattern.permute.xlu0 0
        %474 = vperm.xlu0 %473, %v456
        %v475 = vpop.permute.xlu0 %474
        %v477 = vadd.f32 %v449, %v460
        %v478 = vadd.f32 %v450, %v465
        %v479 = vadd.f32 %v451, %v470
        %v480 = vadd.f32 %v452, %v475
        %vm481 = vcmp.gt.f32.partialorder %v477, 0.0
        %vm482 = vcmp.gt.f32.partialorder %v478, 0.0
        %vm483 = vcmp.gt.f32.partialorder %v479, 0.0
        %vm484 = vcmp.gt.f32.partialorder %v480, 0.0
        %v485 = vmul.f32 %v477, 1.442695
        %v486 = vpow.pop %v485
        %v487 = vmul.f32 %v478, 1.442695
        %v488 = vpow.pop %v487
        %v489 = vmul.f32 %v479, 1.442695
        %v490 = vpow.pop %v489
        %v491 = vmul.f32 %v480, 1.442695
        %v492 = vpow.pop %v491
        %v493 = vsub.f32 %v486, 1.0
        %v494 = vsub.f32 %v488, 1.0
        %v495 = vsub.f32 %v490, 1.0
        %v496 = vsub.f32 %v492, 1.0
        %v497 = vsel %vm481, %v477, %v493
        %v498 = vsel %vm482, %v478, %v494
        %v499 = vsel %vm483, %v479, %v495
        %v500 = vsel %vm484, %v480, %v496
        %v501 = vld [vmem:[%s3] sm:$0xff]
        %v502 = vld [vmem:[%s3 + $0x8] sm:$0xff]
        %v503 = vld [vmem:[%s3 + $0x10] sm:$0xff]
        %v504 = vld [vmem:[%s3 + $0x18] sm:$0xff]
        %505 = vrot.lane.b32.xlu0 %v497, 16
        %v506 = vpop.permute.xlu0 %505
        %v507 = vsel %vm279, %v506, %v497
        %508 = vrot.lane.b32.xlu0 %v498, 16
        %v509 = vpop.permute.xlu0 %508
        %v510 = vsel %vm279, %v509, %v498
        %511 = vrot.lane.b32.xlu0 %v499, 16
        %v512 = vpop.permute.xlu0 %511
        %v513 = vsel %vm279, %v512, %v499
        %514 = vrot.lane.b32.xlu0 %v500, 16
        %v515 = vpop.permute.xlu0 %514
        %v516 = vsel %vm279, %v515, %v500
        %517 = vrot.lane.b32.xlu0 %v507, 16
        %v518 = vpop.permute.xlu0 %517
        %519 = vrot.lane.b32.xlu0 %v510, 16
        %v520 = vpop.permute.xlu0 %519
        %521 = vrot.lane.b32.xlu0 %v513, 16
        %v522 = vpop.permute.xlu0 %521
        %523 = vrot.lane.b32.xlu0 %v516, 16
        %v524 = vpop.permute.xlu0 %523
        %v525 = vsel %vm279, %v518, %v497
        %v526 = vsel %vm279, %v520, %v498
        %v527 = vsel %vm279, %v522, %v499
        %v528 = vsel %vm279, %v524, %v500
        %533 = vrot.lane.b32.xlu0 %v525, 113
        %v534 = vpop.permute.xlu0 %533
        %535 = vrot.lane.b32.xlu0 %v526, 113
        %v536 = vpop.permute.xlu0 %535
        %537 = vrot.lane.b32.xlu0 %v527, 113
        %v538 = vpop.permute.xlu0 %537
        %539 = vrot.lane.b32.xlu0 %v528, 113
        %v540 = vpop.permute.xlu0 %539
        %v545 = vsel %vm291, %v534, 0.0
        %v546 = vsel %vm291, %v536, 0.0
        %v547 = vsel %vm291, %v538, 0.0
        %v548 = vsel %vm291, %v540, 0.0
        %s549 = scalar_lea.vmem %s3, 32
        %v550 = vld [vmem:[%s549] sm:$0xff]
        %v551 = vld [vmem:[%s549 + $0x8] sm:$0xff]
        %v552 = vld [vmem:[%s549 + $0x10] sm:$0xff]
        %v553 = vld [vmem:[%s549 + $0x18] sm:$0xff]
        %vm554 = vcmask 261120
        %v556 = vsel %vm554, %v550, 0
        %v559 = vsel %vm554, %v551, 0
        %v562 = vsel %vm554, %v552, 0
        %v565 = vsel %vm554, %v553, 0
        %567 = vmatpush.msra.mxu0 0.0
        %568 = vmatpush.msra.mxu0 0.0
        %569 = vmatpush.msra.mxu0 0.0
        %570 = vmatpush.msra.mxu0 0.0
        %571 = vmatpush.msra.mxu0 0.0
        %572 = vmatpush.msra.mxu0 0.0
        %573 = vmatpush.msra.mxu0 0.0
        %574 = vmatpush.msra.mxu0 0.0
        %575 = vmatpush.msra.mxu0 0.0
        %576 = vmatpush.msra.mxu0 0.0
        %577 = vmatpush.msra.mxu0 0.0
        %578 = vmatpush.msra.mxu0 0.0
        %579 = vmatpush.msra.mxu0 %v500
        %580 = vmatpush.msra.mxu0 %v499
        %581 = vmatpush.msra.mxu0 %v498
        %582 = vmatpush.msra.mxu0 %v497
        %583 = vmatmul.f32.gmra.mxu0 %v556
        %v584 = vpop.f32.mrf.mxu0
        %v585 = vadd.f32 0.0, %v584
        %586 = vmatmul.f32.gmra.mxu0 %v559
        %v587 = vpop.f32.mrf.mxu0
        %v588 = vadd.f32 0.0, %v587
        %589 = vmatmul.f32.gmra.mxu0 %v562
        %v590 = vpop.f32.mrf.mxu0
        %v591 = vadd.f32 0.0, %v590
        %592 = vmatmul.f32.gmra.mxu0 %v565
        %v593 = vpop.f32.mrf.mxu0
        %v594 = vadd.f32 0.0, %v593
        %595 = vdwg.mxu0
        %v597 = vsel %vm554, %v501, 0
        %v600 = vsel %vm554, %v502, 0
        %v603 = vsel %vm554, %v503, 0
        %v606 = vsel %vm554, %v504, 0
        %608 = vmatpush.msra.mxu0 0.0
        %609 = vmatpush.msra.mxu0 0.0
        %610 = vmatpush.msra.mxu0 0.0
        %611 = vmatpush.msra.mxu0 0.0
        %612 = vmatpush.msra.mxu0 0.0
        %613 = vmatpush.msra.mxu0 0.0
        %614 = vmatpush.msra.mxu0 0.0
        %615 = vmatpush.msra.mxu0 0.0
        %616 = vmatpush.msra.mxu0 0.0
        %617 = vmatpush.msra.mxu0 0.0
        %618 = vmatpush.msra.mxu0 0.0
        %619 = vmatpush.msra.mxu0 0.0
        %620 = vmatpush.msra.mxu0 %v548
        %621 = vmatpush.msra.mxu0 %v547
        %622 = vmatpush.msra.mxu0 %v546
        %623 = vmatpush.msra.mxu0 %v545
        %624 = vmatmul.f32.gmra.mxu0 %v597
        %v625 = vpop.f32.mrf.mxu0
        %v626 = vadd.f32 %v585, %v625
        %627 = vmatmul.f32.gmra.mxu0 %v600
        %v628 = vpop.f32.mrf.mxu0
        %v629 = vadd.f32 %v588, %v628
        %630 = vmatmul.f32.gmra.mxu0 %v603
        %v631 = vpop.f32.mrf.mxu0
        %v632 = vadd.f32 %v591, %v631
        %633 = vmatmul.f32.gmra.mxu0 %v606
        %v634 = vpop.f32.mrf.mxu0
        %v635 = vadd.f32 %v594, %v634
        %636 = vdwg.mxu0
        %s637 = scalar_lea.vmem %s3, 64
        %v638 = vld [vmem:[%s637] sm:$0xff]
        %v639 = vld [vmem:[%s637 + $0x8] sm:$0xff]
        %v640 = vld [vmem:[%s637 + $0x10] sm:$0xff]
        %v641 = vld [vmem:[%s637 + $0x18] sm:$0xff]
        %642 = vrot.lane.b32.xlu0 %v525, 127
        %v643 = vpop.permute.xlu0 %642
        %644 = vrot.lane.b32.xlu0 %v526, 127
        %v645 = vpop.permute.xlu0 %644
        %646 = vrot.lane.b32.xlu0 %v527, 127
        %v647 = vpop.permute.xlu0 %646
        %648 = vrot.lane.b32.xlu0 %v528, 127
        %v649 = vpop.permute.xlu0 %648
        %v654 = vsel %vm400, %v643, 0.0
        %v655 = vsel %vm400, %v645, 0.0
        %v656 = vsel %vm400, %v647, 0.0
        %v657 = vsel %vm400, %v649, 0.0
        %v659 = vsel %vm554, %v638, 0
        %v662 = vsel %vm554, %v639, 0
        %v665 = vsel %vm554, %v640, 0
        %v668 = vsel %vm554, %v641, 0
        %670 = vmatpush.msra.mxu0 0.0
        %671 = vmatpush.msra.mxu0 0.0
        %672 = vmatpush.msra.mxu0 0.0
        %673 = vmatpush.msra.mxu0 0.0
        %674 = vmatpush.msra.mxu0 0.0
        %675 = vmatpush.msra.mxu0 0.0
        %676 = vmatpush.msra.mxu0 0.0
        %677 = vmatpush.msra.mxu0 0.0
        %678 = vmatpush.msra.mxu0 0.0
        %679 = vmatpush.msra.mxu0 0.0
        %680 = vmatpush.msra.mxu0 0.0
        %681 = vmatpush.msra.mxu0 0.0
        %682 = vmatpush.msra.mxu0 %v657
        %683 = vmatpush.msra.mxu0 %v656
        %684 = vmatpush.msra.mxu0 %v655
        %685 = vmatpush.msra.mxu0 %v654
        %686 = vmatmul.f32.gmra.mxu0 %v659
        %v687 = vpop.f32.mrf.mxu0
        %v688 = vadd.f32 0.0, %v687
        %689 = vmatmul.f32.gmra.mxu0 %v662
        %v690 = vpop.f32.mrf.mxu0
        %v691 = vadd.f32 0.0, %v690
        %692 = vmatmul.f32.gmra.mxu0 %v665
        %v693 = vpop.f32.mrf.mxu0
        %v694 = vadd.f32 0.0, %v693
        %695 = vmatmul.f32.gmra.mxu0 %v668
        %v696 = vpop.f32.mrf.mxu0
        %v697 = vadd.f32 0.0, %v696
        %698 = vdwg.mxu0
        %v699 = vadd.f32 %v626, %v688
        %v700 = vadd.f32 %v629, %v691
        %v701 = vadd.f32 %v632, %v694
        %v702 = vadd.f32 %v635, %v697
        %v703 = vld [vmem:[%s4] sm:$0xff]
        %v704 = vld [vmem:[%s4 + $0x8] sm:$0xff]
        %v705 = vld [vmem:[%s4 + $0x10] sm:$0xff]
        %v706 = vld [vmem:[%s4 + $0x18] sm:$0xff]
        %708 = vset.pattern.permute.xlu0 0
        %709 = vperm.xlu0 %708, %v703
        %v710 = vpop.permute.xlu0 %709
        %713 = vset.pattern.permute.xlu0 0
        %714 = vperm.xlu0 %713, %v704
        %v715 = vpop.permute.xlu0 %714
        %718 = vset.pattern.permute.xlu0 0
        %719 = vperm.xlu0 %718, %v705
        %v720 = vpop.permute.xlu0 %719
        %723 = vset.pattern.permute.xlu0 0
        %724 = vperm.xlu0 %723, %v706
        %v725 = vpop.permute.xlu0 %724
        %v727 = vadd.f32 %v699, %v710
        %v728 = vadd.f32 %v700, %v715
        %v729 = vadd.f32 %v701, %v720
        %v730 = vadd.f32 %v702, %v725
        %vm731 = vcmp.gt.f32.partialorder %v727, 0.0
        %vm732 = vcmp.gt.f32.partialorder %v728, 0.0
        %vm733 = vcmp.gt.f32.partialorder %v729, 0.0
        %vm734 = vcmp.gt.f32.partialorder %v730, 0.0
        %v735 = vmul.f32 %v727, 1.442695
        %v736 = vpow.pop %v735
        %v737 = vmul.f32 %v728, 1.442695
        %v738 = vpow.pop %v737
        %v739 = vmul.f32 %v729, 1.442695
        %v740 = vpow.pop %v739
        %v741 = vmul.f32 %v730, 1.442695
        %v742 = vpow.pop %v741
        %v743 = vsub.f32 %v736, 1.0
        %v744 = vsub.f32 %v738, 1.0
        %v745 = vsub.f32 %v740, 1.0
        %v746 = vsub.f32 %v742, 1.0
        %v747 = vsel %vm731, %v727, %v743
        %v748 = vsel %vm732, %v728, %v744
        %v749 = vsel %vm733, %v729, %v745
        %v750 = vsel %vm734, %v730, %v746
        %v751 = vld [vmem:[%s5] sm:$0xf]
        %752 = vrot.lane.b32.xlu0 %v747, 16
        %v753 = vpop.permute.xlu0 %752
        %v754 = vsel %vm279, %v753, %v747
        %755 = vrot.lane.b32.xlu0 %v748, 16
        %v756 = vpop.permute.xlu0 %755
        %v757 = vsel %vm279, %v756, %v748
        %758 = vrot.lane.b32.xlu0 %v749, 16
        %v759 = vpop.permute.xlu0 %758
        %v760 = vsel %vm279, %v759, %v749
        %761 = vrot.lane.b32.xlu0 %v750, 16
        %v762 = vpop.permute.xlu0 %761
        %v763 = vsel %vm279, %v762, %v750
        %764 = vrot.lane.b32.xlu0 %v754, 16
        %v765 = vpop.permute.xlu0 %764
        %766 = vrot.lane.b32.xlu0 %v757, 16
        %v767 = vpop.permute.xlu0 %766
        %768 = vrot.lane.b32.xlu0 %v760, 16
        %v769 = vpop.permute.xlu0 %768
        %770 = vrot.lane.b32.xlu0 %v763, 16
        %v771 = vpop.permute.xlu0 %770
        %v772 = vsel %vm279, %v765, %v747
        %v773 = vsel %vm279, %v767, %v748
        %v774 = vsel %vm279, %v769, %v749
        %v775 = vsel %vm279, %v771, %v750
        %780 = vrot.lane.b32.xlu0 %v772, 113
        %v781 = vpop.permute.xlu0 %780
        %782 = vrot.lane.b32.xlu0 %v773, 113
        %v783 = vpop.permute.xlu0 %782
        %784 = vrot.lane.b32.xlu0 %v774, 113
        %v785 = vpop.permute.xlu0 %784
        %786 = vrot.lane.b32.xlu0 %v775, 113
        %v787 = vpop.permute.xlu0 %786
        %v792 = vsel %vm291, %v781, 0.0
        %v793 = vsel %vm291, %v783, 0.0
        %v794 = vsel %vm291, %v785, 0.0
        %v795 = vsel %vm291, %v787, 0.0
        %s796 = scalar_lea.vmem %s5, 4
        %v797 = vld [vmem:[%s796] sm:$0xf]
        %v799 = vsel %vm554, %v797, 0
        %801 = vmatpush.msra.mxu0 0.0
        %802 = vmatpush.msra.mxu0 0.0
        %803 = vmatpush.msra.mxu0 0.0
        %804 = vmatpush.msra.mxu0 0.0
        %805 = vmatpush.msra.mxu0 0.0
        %806 = vmatpush.msra.mxu0 0.0
        %807 = vmatpush.msra.mxu0 0.0
        %808 = vmatpush.msra.mxu0 0.0
        %809 = vmatpush.msra.mxu0 0.0
        %810 = vmatpush.msra.mxu0 0.0
        %811 = vmatpush.msra.mxu0 0.0
        %812 = vmatpush.msra.mxu0 0.0
        %813 = vmatpush.msra.mxu0 %v750
        %814 = vmatpush.msra.mxu0 %v749
        %815 = vmatpush.msra.mxu0 %v748
        %816 = vmatpush.msra.mxu0 %v747
        %817 = vmatmul.f32.gmra.mxu0 %v799
        %v818 = vpop.f32.mrf.mxu0
        %v819 = vadd.f32 0.0, %v818
        %820 = vdwg.mxu0
        %v822 = vsel %vm554, %v751, 0
        %824 = vmatpush.msra.mxu0 0.0
        %825 = vmatpush.msra.mxu0 0.0
        %826 = vmatpush.msra.mxu0 0.0
        %827 = vmatpush.msra.mxu0 0.0
        %828 = vmatpush.msra.mxu0 0.0
        %829 = vmatpush.msra.mxu0 0.0
        %830 = vmatpush.msra.mxu0 0.0
        %831 = vmatpush.msra.mxu0 0.0
        %832 = vmatpush.msra.mxu0 0.0
        %833 = vmatpush.msra.mxu0 0.0
        %834 = vmatpush.msra.mxu0 0.0
        %835 = vmatpush.msra.mxu0 0.0
        %836 = vmatpush.msra.mxu0 %v795
        %837 = vmatpush.msra.mxu0 %v794
        %838 = vmatpush.msra.mxu0 %v793
        %839 = vmatpush.msra.mxu0 %v792
        %840 = vmatmul.f32.gmra.mxu0 %v822
        %v841 = vpop.f32.mrf.mxu0
        %v842 = vadd.f32 %v819, %v841
        %843 = vdwg.mxu0
        %s844 = scalar_lea.vmem %s5, 8
        %v845 = vld [vmem:[%s844] sm:$0xf]
        %846 = vrot.lane.b32.xlu0 %v772, 127
        %v847 = vpop.permute.xlu0 %846
        %848 = vrot.lane.b32.xlu0 %v773, 127
        %v849 = vpop.permute.xlu0 %848
        %850 = vrot.lane.b32.xlu0 %v774, 127
        %v851 = vpop.permute.xlu0 %850
        %852 = vrot.lane.b32.xlu0 %v775, 127
        %v853 = vpop.permute.xlu0 %852
        %v858 = vsel %vm400, %v847, 0.0
        %v859 = vsel %vm400, %v849, 0.0
        %v860 = vsel %vm400, %v851, 0.0
        %v861 = vsel %vm400, %v853, 0.0
        %v863 = vsel %vm554, %v845, 0
        %865 = vmatpush.msra.mxu0 0.0
        %866 = vmatpush.msra.mxu0 0.0
        %867 = vmatpush.msra.mxu0 0.0
        %868 = vmatpush.msra.mxu0 0.0
        %869 = vmatpush.msra.mxu0 0.0
        %870 = vmatpush.msra.mxu0 0.0
        %871 = vmatpush.msra.mxu0 0.0
        %872 = vmatpush.msra.mxu0 0.0
        %873 = vmatpush.msra.mxu0 0.0
        %874 = vmatpush.msra.mxu0 0.0
        %875 = vmatpush.msra.mxu0 0.0
        %876 = vmatpush.msra.mxu0 0.0
        %877 = vmatpush.msra.mxu0 %v861
        %878 = vmatpush.msra.mxu0 %v860
        %879 = vmatpush.msra.mxu0 %v859
        %880 = vmatpush.msra.mxu0 %v858
        %881 = vmatmul.f32.gmra.mxu0 %v863
        %v882 = vpop.f32.mrf.mxu0
        %v883 = vadd.f32 0.0, %v882
        %884 = vdwg.mxu0
        %v885 = vadd.f32 %v842, %v883
        %v886 = vld [vmem:[%s6] sm:$0xf]
        %888 = vset.pattern.permute.xlu0 0
        %889 = vperm.xlu0 %888, %v886
        %v890 = vpop.permute.xlu0 %889
        %v892 = vadd.f32 %v885, %v890
        %vm893 = vcmask 125952
        %894 = vst.msk [vmem:[%s269] sm:$0xf] %vm893, %v892
        %s895 = sand.u32 %s181, 1
        %s896 = scalar_lea.sflag [#allocation3], %s895
        %s897 = sand.u32 %s181, 1
        %s898 = smul.addr %s897, 4
        %s899 = scalar_lea.vmem [#allocation2], %s898
        // Predicated region
        $region49: #{tpu_custom_call.1} parent=47 // pred_check
          %p900 = pneg %p191
        $region50: #{tpu_custom_call.1} parent=47 // pred_check_branch
          %902 = sbr.rel (%p900) target = $region52
        $region51: #{tpu_custom_call.1} parent=47 // pred_region
          %904 = vsyncadd %s896, 0
          %s905 = smul.addr %s21, 4
          %s906 = scalar_lea.hbm %s7, %s905
          %s908 = sshll.u32 %s899, 4
          %s909 = int_to_ptr.vmem [resolvable:$true] %s908
          %s910 = sshll.u32 %s906, 4
          %s911 = int_to_ptr.hbm [resolvable:$true] %s910
          %913 = dma.vmem_to_hbm [thread:$0]  %s909, 64, %s911, %s896
        $region52: #{tpu_custom_call.1} parent=47 // pred_fallthru
          _
      $region48: #{tpu_custom_call.1} parent=5 // pred_fallthru
        _
      %p914 = scmp.le.s32.totalorder 2, %s16
      // Predicated region
      $region53: #{tpu_custom_call.1} parent=5 // pred_check
        %p915 = pneg %p914
      $region54: #{tpu_custom_call.1} parent=5 // pred_check_branch
        %917 = sbr.rel (%p915) target = $region56
      $region55: #{tpu_custom_call.1} parent=5 // pred_region
        %s918 = ssub.s32 %s16, 2
        // Predicated region
        $region57: #{tpu_custom_call.1} parent=55 // pred_check
          %p919 = pneg %p197
        $region58: #{tpu_custom_call.1} parent=55 // pred_check_branch
          %921 = sbr.rel (%p919) target = $region60
        $region59: #{tpu_custom_call.1} parent=55 // pred_region
          %s922 = sand.u32 %s182, 1
          %s923 = scalar_lea.sflag [#allocation3], %s922
          %s924 = sand.u32 %s182, 1
          %s925 = smul.addr %s924, 4
          %s926 = scalar_lea.vmem [#allocation2], %s925
          %928 = dma.done %s923, 64
        $region60: #{tpu_custom_call.1} parent=55 // pred_fallthru
          _
      $region56: #{tpu_custom_call.1} parent=5 // pred_fallthru
        _
    $region6: #{tpu_custom_call.1} parent=1 // loop_footer
      %s20 = sadd.s32 1, %s16
    $region7: #{tpu_custom_call.1} parent=1 // loop_footer_branch
      %15 = sbr.rel target = $region3
    $region8: #{tpu_custom_call.1} parent=1 // loop_exit
      _
    %929 = vsyncpa [#allocation3], 1
    %s930 = scalar_lea.sflag [#allocation3], 1
    %931 = vsyncpa %s930, 1

</llo_original>
